<compile_context>
chip_gen: v5e
topology: v5e:2x2
jax: 0.10.0
libtpu: 0.0.40
codegen_flags: <defaults>
</compile_context>

<pallas_src>
import functools

import jax
import jax.numpy as jnp
from jax.experimental import pallas as pl
from jax.experimental.pallas import tpu as pltpu


def _attention_kernel(enc_ref, dec_ref, w1t_ref, w2t_ref, v_ref, di_ref, uj_ref,
                      *, compute_dtype, t_chunk):
    # enc_ref: (Bb, T, H)   dec_ref: (Bb, H)
    # w1t_ref / w2t_ref: (H, U) (pre-transposed in the wrapper)   v_ref: (1, U)
    # di_ref: (Bb, H)   uj_ref: (Bb, T)  -- lane-dense, no in-kernel transpose
    Bb, T, H = enc_ref.shape
    U = w1t_ref.shape[1]

    enc = enc_ref[...]                                    # (Bb, T, H)
    w1t = w1t_ref[...]                                    # (H, U)
    w2t = w2t_ref[...]                                    # (H, U)

    # One big MXU matmul over all (batch, time) rows. The reshape is a layout no-op when
    # T is sublane-aligned (the wrapper budgets for the relayout copy when it isn't).
    enc_flat = enc.reshape(Bb * T, H)
    w1e = jnp.dot(enc_flat, w1t, preferred_element_type=jnp.float32)      # (Bb*T, U)
    # W2(decoder) for the whole batch block in a single matmul.
    w2d = jnp.dot(dec_ref[...], w2t, preferred_element_type=jnp.float32)  # (Bb, U)

    pre = w1e.reshape(Bb, T, U) + w2d[:, None, :]                         # (Bb, T, U) f32
    if compute_dtype != jnp.float32:
        # bf16 tanh on v6e/v7x: ~2x EUP throughput and half the vreg/VMEM pressure for `u`.
        pre = pre.astype(compute_dtype)
    u = jnp.tanh(pre)

    # V projection: VPU multiply + lane reduce (f32 accumulation), lane-dense (Bb, T) result.
    v_row = v_ref[...].reshape(1, 1, U).astype(jnp.float32)
    scores = jnp.sum(u * v_row, axis=-1)                                  # (Bb, T) f32

    # Softmax over time (dim=1 of the reference's [B, T, 1] tensor).
    m = jnp.max(scores, axis=-1, keepdims=True)
    e = jnp.exp(scores - m)
    denom = jnp.sum(e, axis=-1, keepdims=True)
    # Exact reciprocal keeps 1e-5 parity with the reference (approx=True would use the EUP).
    aj = e * pl.reciprocal(denom, approx=False)                           # (Bb, T)

    # di_prime[b, :] = sum_t aj[b, t] * enc[b, t, :].
    # Chunk the T reduction so the (Bb, chunk, H) broadcast temp stays bounded instead of
    # materializing a second enc-sized f32 block (the main VMEM-pressure risk at big blocks).
    di = jnp.zeros((Bb, H), jnp.float32)
    for c0 in range(0, T, t_chunk):
        c1 = min(c0 + t_chunk, T)
        di = di + jnp.sum(aj[:, c0:c1, None] * enc[:, c0:c1, :], axis=1)

    di_ref[...] = di.astype(di_ref.dtype)
    uj_ref[...] = scores.astype(uj_ref.dtype)


def attention_forward(encoder_out, decoder_hidden, w1, w2, v, *, compute_dtype=None):
    """encoder_out: [B, T, H], decoder_hidden: [B, H],
    w1, w2: [U, H] (PyTorch nn.Linear layout), v: [1, U] (nn.Linear(units, 1))."""
    B, T, H = encoder_out.shape
    U = w1.shape[0]
    out_dtype = encoder_out.dtype
    itemsize = jnp.dtype(out_dtype).itemsize

    if compute_dtype is None:
        # Follow the input dtype: bf16 inputs (the fast path on v6e/v7x) run tanh in bf16,
        # f32 inputs keep full precision (needed for 1e-5 parity with the reference).
        compute_dtype = out_dtype
    compute_dtype = jnp.dtype(compute_dtype)

    # Pre-transpose the tiny PyTorch-layout weights once in the wrapper so the in-kernel
    # matmuls are plain (M, H) @ (H, U) with no chance of a per-grid-step XLU transpose.
    w1t = w1.T                                    # (H, U)
    w2t = w2.T                                    # (H, U)

    # ------------------------- generation-aware block sizing -------------------------
    try:
        vmem_cap = int(pltpu.get_tpu_info().vmem_capacity_bytes)
    except Exception:
        vmem_cap = 64 << 20                       # assume the smallest generation (v7x)

    sublane = max(8, 32 // itemsize)              # 8 for f32, 16 for bf16
    flatten_free = (T % sublane == 0)             # reshape (Bb,T,H)->(Bb*T,H) is a layout no-op

    # Per-batch working set per grid step (double-buffered inputs + f32 temps + outputs).
    per_batch = (2 * T * H * itemsize             # enc block (double buffered)
                 + 3 * T * U * 4                  # w1e / pre-activation / u (f32 upper bound)
                 + 2 * (H + T) * 4                # di / uj output blocks (double buffered)
                 + 2 * H * itemsize)              # dec block (double buffered)
    if not flatten_free:
        per_batch += T * H * itemsize             # relayout copy of the enc block

    # ~1-4 MiB enc blocks sit at ~85% of the HBM roofline; budget an eighth of VMEM per step
    # so double buffering + temps fit comfortably even on v7x (64 MiB).
    budget = min(8 << 20, vmem_cap // 8)
    b_blk = max(1, budget // per_batch)
    b_blk = min(b_blk, -(-B // 2))                # >= 2 grid steps -> both v7x TCs get work
    b_blk = min(b_blk, B)
    if b_blk < B:
        # Keep the batch-block dim sublane-aligned so the 2-D (b_blk, H)/(b_blk, T) blocks
        # tile cleanly; tiny batches just run as one full block.
        b_blk = (b_blk // 8) * 8
        if b_blk == 0:
            b_blk = B if B <= 8 else 8
            # TODO(synk): for very large T*H/U also tile the time axis (v7x 64 MiB VMEM).
    b_blk = min(b_blk, B)

    grid = (pl.cdiv(B, b_blk),)                   # partial last block: padded rows are
                                                  # computed (rows are independent) but never stored.

    # Bound the (b_blk, t_chunk, H) broadcast temp of the di reduction to ~1 MiB.
    t_chunk = (1 << 20) // max(1, b_blk * H * 4)
    t_chunk = max(8, (t_chunk // 8) * 8)
    t_chunk = int(min(t_chunk, T))

    weights_bytes = 2 * (2 * U * H + U) * itemsize          # double-buffered grid-invariant weights
    vmem_est = b_blk * per_batch + weights_bytes + b_blk * t_chunk * H * 4
    vmem_limit = int(min(max(vmem_cap - (4 << 20), 16 << 20),
                         max(32 << 20, 2 * vmem_est)))

    kernel = functools.partial(_attention_kernel,
                               compute_dtype=compute_dtype,
                               t_chunk=t_chunk)

    # TODO(synk): weights are grid-invariant; pipeline_mode=pl.Buffered(1) (or a one-shot DMA
    # into scratch) would halve their VMEM footprint — negligible at these U, H.
    # TODO(synk): for production T/H < 128, a lane-dense repacked output slab ((B//g, g*T))
    # would turn the masked vst.msk stores into full-lane stores.
    di, uj = pl.pallas_call(
        kernel,
        out_shape=(
            jax.ShapeDtypeStruct((B, H), out_dtype),
            jax.ShapeDtypeStruct((B, T), out_dtype),
        ),
        grid_spec=pltpu.PrefetchScalarGridSpec(
            num_scalar_prefetch=0,
            grid=grid,
            in_specs=[
                pl.BlockSpec((b_blk, T, H), lambda i: (i, 0, 0)),   # encoder_out
                pl.BlockSpec((b_blk, H), lambda i: (i, 0)),         # decoder_hidden
                pl.BlockSpec((H, U), lambda i: (0, 0)),             # W1^T (grid-invariant)
                pl.BlockSpec((H, U), lambda i: (0, 0)),             # W2^T (grid-invariant)
                pl.BlockSpec((1, U), lambda i: (0, 0)),             # V    (grid-invariant)
            ],
            out_specs=[
                pl.BlockSpec((b_blk, H), lambda i: (i, 0)),         # di_prime
                pl.BlockSpec((b_blk, T), lambda i: (i, 0)),         # uj (lane-dense)
            ],
        ),
        compiler_params=pltpu.CompilerParams(
            dimension_semantics=("parallel",),
            vmem_limit_bytes=vmem_limit),
    )(encoder_out, decoder_hidden, w1t, w2t, v)
    return di, uj


def attention_reference(encoder_out, decoder_hidden, w1, w2, v):
    # pure-JAX reference mirroring the PyTorch forward
    dec_t = decoder_hidden[:, None, :]                       # (B, 1, H)
    uj = encoder_out @ w1.T + dec_t @ w2.T                   # (B, T, U)
    uj = jnp.tanh(uj)
    uj = uj @ v.T                                            # (B, T, 1)
    aj = jax.nn.softmax(uj, axis=1)
    di = jnp.sum(aj * encoder_out, axis=1)                   # (B, H)
    return di, uj[..., 0]


if __name__ == "__main__":
    B, T, H, U = 2, 8, 32, 32

    key = jax.random.PRNGKey(0)
    k_enc, k_dec, k_w1, k_w2, k_v = jax.random.split(key, 5)

    encoder_out = jax.random.normal(k_enc, (B, T, H), dtype=jnp.float32)
    decoder_hidden = jax.random.normal(k_dec, (B, H), dtype=jnp.float32)

    # Shapes match nn.Linear(hidden_size, units, bias=False) / nn.Linear(units, 1, bias=False)
    w1 = jax.random.normal(k_w1, (U, H), dtype=jnp.float32) * 0.1   # W1.weight
    w2 = jax.random.normal(k_w2, (U, H), dtype=jnp.float32) * 0.1   # W2.weight
    v = jax.random.normal(k_v, (1, U), dtype=jnp.float32) * 0.1     # V.weight

    di, uj = attention_forward(encoder_out, decoder_hidden, w1, w2, v)
    jax.block_until_ready((di, uj))

    di_ref, uj_ref = attention_reference(encoder_out, decoder_hidden, w1, w2, v)
    assert jnp.allclose(di, di_ref, atol=1e-5, rtol=1e-5), "di_prime mismatch"
    assert jnp.allclose(uj, uj_ref, atol=1e-5, rtol=1e-5), "uj mismatch"

    print("KERNEL_OK")
</pallas_src>

<mosaic_0001>
module attributes {stable_mosaic.version = 11 : i64} {
  func.func @_attention_kernel(%arg0: i32, %arg1: memref<2x8x32xf32, #tpu.memory_space<vmem>>, %arg2: memref<2x32xf32, #tpu.memory_space<vmem>>, %arg3: memref<32x32xf32, #tpu.memory_space<vmem>>, %arg4: memref<32x32xf32, #tpu.memory_space<vmem>>, %arg5: memref<1x32xf32, #tpu.memory_space<vmem>>, %arg6: memref<2x32xf32, #tpu.memory_space<vmem>>, %arg7: memref<2x8xf32, #tpu.memory_space<vmem>>) attributes {dimension_semantics = [#tpu.dimension_semantics<parallel>], iteration_bounds = array<i64: 1>, scalar_prefetch = 0 : i64, scratch_operands = 0 : i64, tpu.core_type = #tpu.core_type<tc>, window_params = [{transform_indices = @transform_0, window_bounds = array<i64: 2, 8, 32>}, {transform_indices = @transform_1, window_bounds = array<i64: 2, 32>}, {pipeline_mode = #tpu.pipeline_mode<synchronous>, transform_indices = @transform_2, window_bounds = array<i64: 32, 32>}, {pipeline_mode = #tpu.pipeline_mode<synchronous>, transform_indices = @transform_3, window_bounds = array<i64: 32, 32>}, {pipeline_mode = #tpu.pipeline_mode<synchronous>, transform_indices = @transform_4, window_bounds = array<i64: 1, 32>}, {transform_indices = @transform_5, window_bounds = array<i64: 2, 32>}, {transform_indices = @transform_6, window_bounds = array<i64: 2, 8>}]} {
    %c0 = arith.constant 0 : index
    %c0_0 = arith.constant 0 : index
    %c0_1 = arith.constant 0 : index
    %0 = vector.load %arg1[%c0, %c0_0, %c0_1] : memref<2x8x32xf32, #tpu.memory_space<vmem>>, vector<2x8x32xf32>
    %c0_2 = arith.constant 0 : index
    %c0_3 = arith.constant 0 : index
    %1 = vector.load %arg3[%c0_2, %c0_3] : memref<32x32xf32, #tpu.memory_space<vmem>>, vector<32x32xf32>
    %c0_4 = arith.constant 0 : index
    %c0_5 = arith.constant 0 : index
    %2 = vector.load %arg4[%c0_4, %c0_5] : memref<32x32xf32, #tpu.memory_space<vmem>>, vector<32x32xf32>
    %3 = vector.shape_cast %0 : vector<2x8x32xf32> to vector<16x32xf32>
    %cst = arith.constant dense<0.000000e+00> : vector<16x32xf32>
    %4 = tpu.matmul %3, %1, %cst {dimension_numbers = #tpu.dot_dimension_numbers<[1], [0], [0], [1], [0, 0, 1, 1], [], []>} : vector<16x32xf32>, vector<32x32xf32>, vector<16x32xf32> -> vector<16x32xf32>
    %c0_6 = arith.constant 0 : index
    %c0_7 = arith.constant 0 : index
    %5 = vector.load %arg2[%c0_6, %c0_7] : memref<2x32xf32, #tpu.memory_space<vmem>>, vector<2x32xf32>
    %cst_8 = arith.constant dense<0.000000e+00> : vector<2x32xf32>
    %6 = tpu.matmul %5, %2, %cst_8 {dimension_numbers = #tpu.dot_dimension_numbers<[1], [0], [0], [1], [0, 0, 1, 1], [], []>} : vector<2x32xf32>, vector<32x32xf32>, vector<2x32xf32> -> vector<2x32xf32>
    %7 = vector.shape_cast %4 : vector<16x32xf32> to vector<2x8x32xf32>
    %8 = vector.shape_cast %6 : vector<2x32xf32> to vector<2x1x32xf32>
    %9 = vector.broadcast %8 : vector<2x1x32xf32> to vector<2x8x32xf32>
    %10 = arith.addf %7, %9 : vector<2x8x32xf32>
    %11 = math.tanh %10 : vector<2x8x32xf32>
    %c0_9 = arith.constant 0 : index
    %c0_10 = arith.constant 0 : index
    %12 = vector.load %arg5[%c0_9, %c0_10] : memref<1x32xf32, #tpu.memory_space<vmem>>, vector<1x32xf32>
    %13 = vector.shape_cast %12 : vector<1x32xf32> to vector<1x1x32xf32>
    %14 = vector.broadcast %13 : vector<1x1x32xf32> to vector<2x8x32xf32>
    %15 = arith.mulf %11, %14 : vector<2x8x32xf32>
    %cst_11 = arith.constant dense<0.000000e+00> : vector<2x8xf32>
    %16 = vector.multi_reduction <add>, %15, %cst_11 [2] : vector<2x8x32xf32> to vector<2x8xf32>
    %cst_12 = arith.constant dense<0xFF800000> : vector<2xf32>
    %17 = vector.multi_reduction <maximumf>, %16, %cst_12 [1] : vector<2x8xf32> to vector<2xf32>
    %18 = vector.shape_cast %17 : vector<2xf32> to vector<2x1xf32>
    %19 = vector.broadcast %18 : vector<2x1xf32> to vector<2x8xf32>
    %20 = arith.subf %16, %19 : vector<2x8xf32>
    %21 = math.exp %20 : vector<2x8xf32>
    %cst_13 = arith.constant dense<0.000000e+00> : vector<2xf32>
    %22 = vector.multi_reduction <add>, %21, %cst_13 [1] : vector<2x8xf32> to vector<2xf32>
    %23 = vector.shape_cast %22 : vector<2xf32> to vector<2x1xf32>
    %24 = tpu.reciprocal %23 : vector<2x1xf32> -> vector<2x1xf32>
    %25 = vector.broadcast %24 : vector<2x1xf32> to vector<2x8xf32>
    %26 = arith.mulf %21, %25 : vector<2x8xf32>
    %cst_14 = arith.constant 0.000000e+00 : f32
    %27 = vector.broadcast %cst_14 : f32 to vector<2x32xf32>
    %28 = vector.shape_cast %26 : vector<2x8xf32> to vector<2x8x1xf32>
    %29 = vector.broadcast %28 : vector<2x8x1xf32> to vector<2x8x32xf32>
    %30 = arith.mulf %29, %0 : vector<2x8x32xf32>
    %cst_15 = arith.constant dense<0.000000e+00> : vector<2x32xf32>
    %31 = vector.multi_reduction <add>, %30, %cst_15 [1] : vector<2x8x32xf32> to vector<2x32xf32>
    %32 = arith.addf %27, %31 : vector<2x32xf32>
    %c0_16 = arith.constant 0 : index
    %c0_17 = arith.constant 0 : index
    %33 = vector.load %arg6[%c0_16, %c0_17] : memref<2x32xf32, #tpu.memory_space<vmem>>, vector<2x32xf32>
    tpu.vector_store %arg6[%c0_16, %c0_17], %32 {strides = array<i32>} : memref<2x32xf32, #tpu.memory_space<vmem>>, vector<2x32xf32>,
    %c0_18 = arith.constant 0 : index
    %c0_19 = arith.constant 0 : index
    %34 = vector.load %arg7[%c0_18, %c0_19] : memref<2x8xf32, #tpu.memory_space<vmem>>, vector<2x8xf32>
    tpu.vector_store %arg7[%c0_18, %c0_19], %16 {strides = array<i32>} : memref<2x8xf32, #tpu.memory_space<vmem>>, vector<2x8xf32>,
    return
  }
  func.func @transform_0(%arg0: i32) -> (i32, i32, i32) {
    %c0_i32 = arith.constant 0 : i32
    %c0_i32_0 = arith.constant 0 : i32
    %c0_i32_1 = arith.constant 0 : i32
    return %arg0, %c0_i32, %c0_i32_0 : i32, i32, i32
  }
  func.func @transform_1(%arg0: i32) -> (i32, i32) {
    %c0_i32 = arith.constant 0 : i32
    %c0_i32_0 = arith.constant 0 : i32
    return %arg0, %c0_i32 : i32, i32
  }
  func.func @transform_2(%arg0: i32) -> (i32, i32) {
    %c0_i32 = arith.constant 0 : i32
    %c0_i32_0 = arith.constant 0 : i32
    %c0_i32_1 = arith.constant 0 : i32
    return %c0_i32, %c0_i32_0 : i32, i32
  }
  func.func @transform_3(%arg0: i32) -> (i32, i32) {
    %c0_i32 = arith.constant 0 : i32
    %c0_i32_0 = arith.constant 0 : i32
    %c0_i32_1 = arith.constant 0 : i32
    return %c0_i32, %c0_i32_0 : i32, i32
  }
  func.func @transform_4(%arg0: i32) -> (i32, i32) {
    %c0_i32 = arith.constant 0 : i32
    %c0_i32_0 = arith.constant 0 : i32
    %c0_i32_1 = arith.constant 0 : i32
    return %c0_i32, %c0_i32_0 : i32, i32
  }
  func.func @transform_5(%arg0: i32) -> (i32, i32) {
    %c0_i32 = arith.constant 0 : i32
    %c0_i32_0 = arith.constant 0 : i32
    return %arg0, %c0_i32 : i32, i32
  }
  func.func @transform_6(%arg0: i32) -> (i32, i32) {
    %c0_i32 = arith.constant 0 : i32
    %c0_i32_0 = arith.constant 0 : i32
    return %arg0, %c0_i32 : i32, i32
  }
}

</mosaic_0001>

<llo_original>
// kernel: tpu_custom_call.1
$region0: #{tpu_custom_call.1}
  #allocation0 [shape = 'u32[]', space=smem, size = 0x4, offset = 0x4, fixed_abs, tag = 'smem constant byte address 0x4 - core index']
  #allocation1 [shape = 'u32[72,128]{1,0:T(1,128)}', space=vmem, size = 0x9000, scoped, tag = 'internal scratch']
  %s0 = inlined_call_operand.hbm [shape: f32[2,8,32], index: 0, kind: input, shape index: {}]
  %s1 = inlined_call_operand.hbm [shape: f32[2,32], index: 1, kind: input, shape index: {}]
  %s2 = inlined_call_operand.hbm [shape: f32[32,32], index: 2, kind: input, shape index: {}]
  %s3 = inlined_call_operand.hbm [shape: f32[32,32], index: 3, kind: input, shape index: {}]
  %s4 = inlined_call_operand.vmem [shape: f32[1,32], index: 4, kind: input, shape index: {}]
  %s5 = inlined_call_operand.hbm [shape: f32[2,32], index: 5, kind: output, shape index: {0}]
  %s6 = inlined_call_operand.hbm [shape: f32[2,8], index: 6, kind: output, shape index: {1}]
  %7 = xla_tuple %s5, %s6
  %s8 = sld [smem:[#allocation0]]
  $region54: #{tpu_custom_call.1} parent=0
    _
  %s10 = ssub.s32 1, %s8
  %s11 = scalar_select 0, %s10, %s8
  $region1: #{tpu_custom_call.1} parent=0
    #allocation2 [shape = 'u8[8192]{0}', space=vmem, size = 0x2000, scoped, tag = 'input window, operand 0, single buffered']
    #allocation3 [shape = 's32[1]{0}', space=sflag, size = 0x4, scoped, tag = 'scoped memory for tpu_custom_call.1']
    #allocation4 [shape = 's32[1]{0}', space=sflag, size = 0x4, scoped, tag = 'scoped memory for tpu_custom_call.1']
    #allocation5 [shape = 'u8[1024]{0}', space=vmem, size = 0x400, scoped, tag = 'input window, operand 1, single buffered']
    #allocation6 [shape = 's32[1]{0}', space=sflag, size = 0x4, scoped, tag = 'scoped memory for tpu_custom_call.1']
    #allocation7 [shape = 'u8[16384]{0}', space=vmem, size = 0x4000, scoped, tag = 'input window, operand 2, single buffered']
    #allocation8 [shape = 'u8[16384]{0}', space=vmem, size = 0x4000, scoped, tag = 'input window, operand 3, single buffered']
    #allocation9 [shape = 's32[1]{0}', space=sflag, size = 0x4, scoped, tag = 'scoped memory for tpu_custom_call.1']
    #allocation10 [shape = 'u8[1024]{0}', space=vmem, size = 0x400, scoped, tag = 'output window, operand 0, single buffered']
    #allocation11 [shape = 'u8[1024]{0}', space=vmem, size = 0x400, scoped, tag = 'output window, operand 1, single buffered']
    #allocation12 [shape = 's32[1]{0}', space=sflag, size = 0x4, scoped, tag = 'scoped memory for tpu_custom_call.1']
    %12 = vsyncpa [#allocation3], 0
    %13 = vsyncpa [#allocation6], 0
    %14 = vsyncpa [#allocation9], 0
    %15 = vsyncpa [#allocation4], 0
    %16 = vsyncpa [#allocation12], 0
    // Predicated region
    $region2: #{tpu_custom_call.1} parent=1 // pred_check
      _
    $region3: #{tpu_custom_call.1} parent=1 // pred_check_branch
      %18 = sbr.rel (0) target = $region5
    $region4: #{tpu_custom_call.1} parent=1 // pred_region
      %20 = vsyncadd [#allocation3], 0
      %s21 = sshll.u32 %s0, 4
      %s22 = int_to_ptr.hbm [resolvable:$true] %s21
      %s23 = sshll.u32 [#allocation2], 4
      %s24 = int_to_ptr.vmem [resolvable:$true] %s23
      %29 = dma.hbm_to_vmem [thread:$0]  %s22, 256, %s24, [#allocation3], 128, 128, 8
    $region5: #{tpu_custom_call.1} parent=1 // pred_fallthru
      _
    // Predicated region
    $region6: #{tpu_custom_call.1} parent=1 // pred_check
      _
    $region7: #{tpu_custom_call.1} parent=1 // pred_check_branch
      %31 = sbr.rel (0) target = $region9
    $region8: #{tpu_custom_call.1} parent=1 // pred_region
      %33 = vsyncadd [#allocation6], 0
      %s35 = sshll.u32 %s1, 4
      %s36 = int_to_ptr.hbm [resolvable:$true] %s35
      %s37 = sshll.u32 [#allocation5], 4
      %s38 = int_to_ptr.vmem [resolvable:$true] %s37
      %40 = dma.hbm_to_vmem [thread:$0]  %s36, 32, %s38, [#allocation6]
    $region9: #{tpu_custom_call.1} parent=1 // pred_fallthru
      _
    // Predicated region
    $region10: #{tpu_custom_call.1} parent=1 // pred_check
      _
    $region11: #{tpu_custom_call.1} parent=1 // pred_check_branch
      %42 = sbr.rel (0) target = $region13
    $region12: #{tpu_custom_call.1} parent=1 // pred_region
      %44 = vsyncadd [#allocation6], 0
      %s45 = sshll.u32 %s2, 4
      %s46 = int_to_ptr.hbm [resolvable:$true] %s45
      %s47 = sshll.u32 [#allocation7], 4
      %s48 = int_to_ptr.vmem [resolvable:$true] %s47
      %53 = dma.hbm_to_vmem [thread:$0]  %s46, 512, %s48, [#allocation6], 128, 128, 8
    $region13: #{tpu_custom_call.1} parent=1 // pred_fallthru
      _
    // Predicated region
    $region14: #{tpu_custom_call.1} parent=1 // pred_check
      _
    $region15: #{tpu_custom_call.1} parent=1 // pred_check_branch
      %55 = sbr.rel (0) target = $region17
    $region16: #{tpu_custom_call.1} parent=1 // pred_region
      %57 = vsyncadd [#allocation9], 0
      %s58 = sshll.u32 %s3, 4
      %s59 = int_to_ptr.hbm [resolvable:$true] %s58
      %s60 = sshll.u32 [#allocation8], 4
      %s61 = int_to_ptr.vmem [resolvable:$true] %s60
      %66 = dma.hbm_to_vmem [thread:$0]  %s59, 512, %s61, [#allocation9], 128, 128, 8
    $region17: #{tpu_custom_call.1} parent=1 // pred_fallthru
      _
    // Predicated region
    $region18: #{tpu_custom_call.1} parent=1 // pred_check
      _
    $region19: #{tpu_custom_call.1} parent=1 // pred_check_branch
      %68 = sbr.rel (0) target = $region21
    $region20: #{tpu_custom_call.1} parent=1 // pred_region
      _
    $region21: #{tpu_custom_call.1} parent=1 // pred_fallthru
      _
    // Predicated region
    $region22: #{tpu_custom_call.1} parent=1 // pred_check
      _
    $region23: #{tpu_custom_call.1} parent=1 // pred_check_branch
      %70 = sbr.rel (0) target = $region25
    $region24: #{tpu_custom_call.1} parent=1 // pred_region
      %72 = dma.done [#allocation3], 256
    $region25: #{tpu_custom_call.1} parent=1 // pred_fallthru
      _
    // Predicated region
    $region26: #{tpu_custom_call.1} parent=1 // pred_check
      _
    $region27: #{tpu_custom_call.1} parent=1 // pred_check_branch
      %74 = sbr.rel (0) target = $region29
    $region28: #{tpu_custom_call.1} parent=1 // pred_region
      %76 = dma.done [#allocation6], 32
    $region29: #{tpu_custom_call.1} parent=1 // pred_fallthru
      _
    // Predicated region
    $region30: #{tpu_custom_call.1} parent=1 // pred_check
      _
    $region31: #{tpu_custom_call.1} parent=1 // pred_check_branch
      %78 = sbr.rel (0) target = $region33
    $region32: #{tpu_custom_call.1} parent=1 // pred_region
      %80 = dma.done [#allocation6], 512
    $region33: #{tpu_custom_call.1} parent=1 // pred_fallthru
      _
    // Predicated region
    $region34: #{tpu_custom_call.1} parent=1 // pred_check
      _
    $region35: #{tpu_custom_call.1} parent=1 // pred_check_branch
      %82 = sbr.rel (0) target = $region37
    $region36: #{tpu_custom_call.1} parent=1 // pred_region
      %84 = dma.done [#allocation9], 512
    $region37: #{tpu_custom_call.1} parent=1 // pred_fallthru
      _
    %v85 = vld [vmem:[#allocation2] sm:$0xff]
    %v86 = vld [vmem:[#allocation2 + $0x8] sm:$0xff]
    %v87 = vld [vmem:[#allocation7] sm:$0xff]
    %v88 = vld [vmem:[#allocation7 + $0x8] sm:$0xff]
    %v89 = vld [vmem:[#allocation7 + $0x10] sm:$0xff]
    %v90 = vld [vmem:[#allocation7 + $0x18] sm:$0xff]
    %v91 = vld [vmem:[#allocation8] sm:$0xff]
    %v92 = vld [vmem:[#allocation8 + $0x8] sm:$0xff]
    %v93 = vld [vmem:[#allocation8 + $0x10] sm:$0xff]
    %v94 = vld [vmem:[#allocation8 + $0x18] sm:$0xff]
    %vm95 = vcmask 261120
    %v97 = vsel %vm95, %v85, 0
    %v100 = vsel %vm95, %v86, 0
    %102 = vmatpush.msra.mxu0 0.0
    %103 = vmatpush.msra.mxu0 0.0
    %104 = vmatpush.msra.mxu0 0.0
    %105 = vmatpush.msra.mxu0 0.0
    %106 = vmatpush.msra.mxu0 0.0
    %107 = vmatpush.msra.mxu0 0.0
    %108 = vmatpush.msra.mxu0 0.0
    %109 = vmatpush.msra.mxu0 0.0
    %110 = vmatpush.msra.mxu0 0.0
    %111 = vmatpush.msra.mxu0 0.0
    %112 = vmatpush.msra.mxu0 0.0
    %113 = vmatpush.msra.mxu0 0.0
    %114 = vmatpush.msra.mxu0 %v90
    %115 = vmatpush.msra.mxu0 %v89
    %116 = vmatpush.msra.mxu0 %v88
    %117 = vmatpush.msra.mxu0 %v87
    %118 = vmatmul.f32.gmra.mxu0 %v97
    %v119 = vpop.f32.mrf.mxu0
    %v120 = vadd.f32 0.0, %v119
    %121 = vmatmul.f32.gmra.mxu0 %v100
    %v122 = vpop.f32.mrf.mxu0
    %v123 = vadd.f32 0.0, %v122
    %124 = vdwg.mxu0
    %v125 = vld [vmem:[#allocation5] sm:$0x3]
    %v127 = vsel %vm95, %v125, 0
    %129 = vmatpush.msra.mxu0 0.0
    %130 = vmatpush.msra.mxu0 0.0
    %131 = vmatpush.msra.mxu0 0.0
    %132 = vmatpush.msra.mxu0 0.0
    %133 = vmatpush.msra.mxu0 0.0
    %134 = vmatpush.msra.mxu0 0.0
    %135 = vmatpush.msra.mxu0 0.0
    %136 = vmatpush.msra.mxu0 0.0
    %137 = vmatpush.msra.mxu0 0.0
    %138 = vmatpush.msra.mxu0 0.0
    %139 = vmatpush.msra.mxu0 0.0
    %140 = vmatpush.msra.mxu0 0.0
    %141 = vmatpush.msra.mxu0 %v94
    %142 = vmatpush.msra.mxu0 %v93
    %143 = vmatpush.msra.mxu0 %v92
    %144 = vmatpush.msra.mxu0 %v91
    %145 = vmatmul.f32.gmra.mxu0 %v127
    %v146 = vpop.f32.mrf.mxu0
    %v147 = vadd.f32 0.0, %v146
    %148 = vdwg.mxu0
    %v150 = vrot.slane %v147, 1
    %v151 = vperm.slane %v147, 0
    %v152 = vperm.slane %v150, 0
    %v155 = vadd.f32 %v120, %v151
    %v156 = vadd.f32 %v123, %v152
    %v157 = vtanh.pop %v155
    %v158 = vtanh.pop %v156
    %v159 = vld [vmem:[%s4] sm:$0x1]
    %v161 = vperm.slane %v159, 0
    %v163 = vmul.f32 %v157, %v161
    %v164 = vmul.f32 %v158, %v161
    %v165 = vsel %vm95, %v163, 0.0
    %166 = vadd.xlane.f32.xlu0 %v165
    %v167 = vpop.xlane.xlu0 %166
    %v168 = vsel %vm95, %v164, 0.0
    %169 = vadd.xlane.f32.xlu0 %v168
    %v170 = vpop.xlane.xlu0 %169
    %v173 = vlaneseq
    %v174 = vand.u32 %v173, 127
    %v175 = vperm.slane %v167, %v174
    %v176 = vperm.slane %v170, %v174
    %vm177 = vcmask 1041409
    %v178 = vsel %vm177, %v176, %v175
    %vm180 = vcmask 58368
    %v181 = vsel %vm180, %v178, -inf
    %182 = vmax.xlane.f32.xlu0 %v181
    %v183 = vpop.xlane.xlu0 %182
    %v185 = vperm.slane %v183, 0
    %v186 = vperm.slane %v183, 1
    %v189 = vsub.f32 %v167, %v185
    %v190 = vsub.f32 %v170, %v186
    %v191 = vmul.f32 %v189, 1.442695
    %v192 = vpow.pop %v191
    %v193 = vmul.f32 %v190, 1.442695
    %v194 = vpow.pop %v193
    %197 = vset.pattern.permute.xlu0 0
    %198 = vperm.xlu0 %197, %v192
    %v199 = vpop.permute.xlu0 %198
    %200 = vset.pattern.permute.xlu0 0
    %201 = vperm.xlu0 %200, %v194
    %v202 = vpop.permute.xlu0 %201
    %v203 = vperm.slane %v199, %v174
    %v204 = vperm.slane %v202, %v174
    %v205 = vsel %vm177, %v204, %v203
    %v207 = vsel %vm180, %v205, 0.0
    %208 = vadd.xlane.f32.xlu0 %v207
    %v209 = vpop.xlane.xlu0 %208
    %v210 = vrcp.pop %v209
    %v211 = vmul.f32 %v209, %v210
    %v212 = vsub.f32 1.0, %v211
    %v213 = vmul.f32 %v210, %v212
    %v214 = vadd.f32 %v210, %v213
    %vm215 = vweird.f32 %v209
    %vm216 = vweird.f32 %v210
    %vm217 = vmor %vm215, %vm216
    %v218 = vsel %vm217, %v210, %v214
    %v219 = vand.u32 2147483647, %v209
    %vm220 = vcmp.eq.f32.partialorder %v219, 8.507059e+37
    %v221 = vand.u32 %v209, 2147483648
    %v222 = vor.u32 1.1754944e-38, %v221
    %v223 = vsel %vm220, %v222, %v218
    %v225 = vperm.slane %v223, 0
    %v226 = vperm.slane %v223, 1
    %v229 = vmul.f32 %v192, %v225
    %v230 = vmul.f32 %v194, %v226
    %232 = vset.pattern.permute.xlu0 0
    %233 = vperm.xlu0 %232, %v229
    %v234 = vpop.permute.xlu0 %233
    %237 = vset.pattern.permute.xlu0 0
    %238 = vperm.xlu0 %237, %v230
    %v239 = vpop.permute.xlu0 %238
    %v241 = vmul.f32 %v234, %v85
    %v242 = vmul.f32 %v239, %v86
    %v243 = vsel %vm95, %v241, 0.0
    %v244 = vrot.slane %v243, 4
    %v245 = vadd.f32 %v243, %v244
    %v246 = vrot.slane %v245, 2
    %v247 = vadd.f32 %v245, %v246
    %v248 = vrot.slane %v247, 1
    %v249 = vadd.f32 %v247, %v248
    %v250 = vsel %vm95, %v242, 0.0
    %v251 = vrot.slane %v250, 4
    %v252 = vadd.f32 %v250, %v251
    %v253 = vrot.slane %v252, 2
    %v254 = vadd.f32 %v252, %v253
    %v255 = vrot.slane %v254, 1
    %v256 = vadd.f32 %v254, %v255
    %v257 = vadd.f32 %v249, 0.0
    %v258 = vadd.f32 %v256, 0.0
    %v261 = vsel %vm177, %v258, %v257
    %vm263 = vcmask 254976
    %264 = vst.msk [vmem:[#allocation10] sm:$0x3] %vm263, %v261
    %265 = vst.msk [vmem:[#allocation11] sm:$0x3] %vm180, %v178
    // Predicated region
    $region38: #{tpu_custom_call.1} parent=1 // pred_check
      _
    $region39: #{tpu_custom_call.1} parent=1 // pred_check_branch
      %267 = sbr.rel (0) target = $region41
    $region40: #{tpu_custom_call.1} parent=1 // pred_region
      %269 = vsyncadd [#allocation4], 0
      %s271 = sshll.u32 [#allocation10], 4
      %s272 = int_to_ptr.vmem [resolvable:$true] %s271
      %s273 = sshll.u32 %s5, 4
      %s274 = int_to_ptr.hbm [resolvable:$true] %s273
      %276 = dma.vmem_to_hbm [thread:$0]  %s272, 32, %s274, [#allocation4]
    $region41: #{tpu_custom_call.1} parent=1 // pred_fallthru
      _
    // Predicated region
    $region42: #{tpu_custom_call.1} parent=1 // pred_check
      _
    $region43: #{tpu_custom_call.1} parent=1 // pred_check_branch
      %278 = sbr.rel (0) target = $region45
    $region44: #{tpu_custom_call.1} parent=1 // pred_region
      %280 = vsyncadd [#allocation12], 0
      %s282 = sshll.u32 [#allocation11], 4
      %s283 = int_to_ptr.vmem [resolvable:$true] %s282
      %s284 = sshll.u32 %s6, 4
      %s285 = int_to_ptr.hbm [resolvable:$true] %s284
      %287 = dma.vmem_to_hbm [thread:$0]  %s283, 32, %s285, [#allocation12]
    $region45: #{tpu_custom_call.1} parent=1 // pred_fallthru
      _
    // Predicated region
    $region46: #{tpu_custom_call.1} parent=1 // pred_check
      _
    $region47: #{tpu_custom_call.1} parent=1 // pred_check_branch
      %289 = sbr.rel (0) target = $region49
    $region48: #{tpu_custom_call.1} parent=1 // pred_region
      %291 = dma.done [#allocation4], 32
    $region49: #{tpu_custom_call.1} parent=1 // pred_fallthru
      _
    // Predicated region
    $region50: #{tpu_custom_call.1} parent=1 // pred_check
      _
    $region51: #{tpu_custom_call.1} parent=1 // pred_check_branch
      %293 = sbr.rel (0) target = $region53
    $region52: #{tpu_custom_call.1} parent=1 // pred_region
      %295 = dma.done [#allocation12], 32
    $region53: #{tpu_custom_call.1} parent=1 // pred_fallthru
      _
    %296 = vsyncpa [#allocation3], 1
    %297 = vsyncpa [#allocation6], 1
    %298 = vsyncpa [#allocation9], 1
    %299 = vsyncpa [#allocation4], 1
    %300 = vsyncpa [#allocation12], 1

</llo_original>
